<compile_context>
chip_gen: v7x
topology: tpu7x:2x2x1
jax: 0.10.0
libtpu: 0.0.40
codegen_flags: <defaults>
</compile_context>

<pallas_src>
import functools

import jax
import jax.numpy as jnp
from jax.experimental import pallas as pl
from jax.experimental.pallas import tpu as pltpu

_LANES = 512                      # lane-dense last dim (multiple of 128 -> unmasked vst)
_MAX_TILE_ROWS = 512              # rows per grid step (multiple of 8)
_VMEM_BUDGET = 12 * 1024 * 1024   # conservative per-step budget incl. double buffering
_PALLAS_MIN_ELEMS = 1 << 15       # below this, XLA fusion beats pallas_call fixed cost


def _round_up(x, m):
    return (x + m - 1) // m * m


def within_layer_kernel(rho_ref, score1_ref, datt_ref, out1_ref):
    """out1 = score1 + rho_w * sum_k datt[k] on a lane-dense (tile_rows, 512) tile.

    rho_ref:    SMEM (1,)                 f32
    score1_ref: VMEM (tile_rows, 512)     f32
    datt_ref:   VMEM (K, tile_rows, 512)  f32
    out1_ref:   VMEM (tile_rows, 512)     f32
    """
    rho_w = rho_ref[0]
    # K is the leading (non-vreg) axis: the reduction is K-1 VPU vadds and never
    # touches the XLU/MXU.  For large K make K a trailing "arbitrary" grid axis
    # with a resident accumulator instead of holding the whole slab in VMEM;
    # here K <= 2 ('a8,a9'), so the (K, tile) block is a few hundred KiB.
    out1_ref[...] = score1_ref[...] + rho_w * jnp.sum(datt_ref[...], axis=0)


@functools.partial(jax.jit, static_argnames=("force_pallas",))
def within_layer_forward(score1, score2, datt_stack, rho_w, *, force_pallas=False):
    """score1/score2: (B,C,Q) f32; datt_stack: (K,B,C,Q) f32; rho_w: (1,) f32."""
    B, C, Q = score1.shape
    K = datt_stack.shape[0]
    N = B * C * Q

    # constr_on == '1'  =>  datt2 == 0  =>  constrained_score2 == score2.
    out2 = score2

    # Toy sizes: a pallas_call's launch/pipeline overhead exceeds the whole
    # FLOP/byte budget, so let XLA fuse the elementwise expression instead.
    if not force_pallas and N < _PALLAS_MIN_ELEMS:
        out1 = score1 + rho_w[0] * jnp.sum(datt_stack, axis=0)
        return out1, out2

    # ---- lane-dense, sublane-full flatten: (rows, 512) with rows % 8 == 0 ----
    rows = _round_up(max(int(pl.cdiv(N, _LANES)), 1), 8)

    # Largest tile that fits the conservative VMEM budget:
    # (1 score + K datt + 1 out) tiles, double-buffered by the pipeline.
    tile_rows = _MAX_TILE_ROWS
    while tile_rows > 8 and (2 + K) * tile_rows * _LANES * 4 * 2 > _VMEM_BUDGET:
        tile_rows //= 2
    if rows <= tile_rows:
        tile_rows = rows                       # single step, block == full array
    else:
        rows = _round_up(rows, tile_rows)      # exact grid, no partial blocks
    grid = (rows // tile_rows,)

    padded_n = rows * _LANES
    pad = padded_n - N

    score1_flat = score1.reshape(-1)
    datt_flat = datt_stack.reshape(K, -1)
    if pad:
        score1_flat = jnp.pad(score1_flat, (0, pad))
        datt_flat = jnp.pad(datt_flat, ((0, 0), (0, pad)))
    score1_2d = score1_flat.reshape(rows, _LANES)
    datt_3d = datt_flat.reshape(K, rows, _LANES)

    cost = pl.CostEstimate(
        flops=(K + 1) * padded_n,          # K-1 adds + 1 mul + 1 add per element
        transcendentals=0,
        bytes_accessed=(K + 2) * padded_n * 4,
    )

    out_2d = pl.pallas_call(
        within_layer_kernel,
        out_shape=jax.ShapeDtypeStruct((rows, _LANES), score1.dtype),
        grid=grid,
        in_specs=[
            pl.BlockSpec(memory_space=pltpu.MemorySpace.SMEM),           # rho_w (1,)
            pl.BlockSpec((tile_rows, _LANES), lambda i: (i, 0)),         # score1
            pl.BlockSpec((K, tile_rows, _LANES), lambda i: (0, i, 0)),   # datt stack
        ],
        out_specs=pl.BlockSpec((tile_rows, _LANES), lambda i: (i, 0)),
        compiler_params=pltpu.CompilerParams(
            # Shards the row grid across v7x's 2 TensorCores; no-op on v5e/v6e.
            dimension_semantics=("parallel",),
        ),
        cost_estimate=cost,
    )(rho_w, score1_2d, datt_3d)

    out1 = out_2d.reshape(-1)[:N].reshape(B, C, Q)
    return out1, out2


if __name__ == "__main__":
    # Small shapes consistent with view(1, batch_l, context_l, max_query_l).
    B, C, Q = 2, 16, 8     # batch_l, context_l, max_query_l
    K = 2                  # two within-constraint layers ('a8,a9')

    key = jax.random.PRNGKey(0)
    k1, k2, k3, k4 = jax.random.split(key, 4)

    score1 = jax.random.normal(k1, (B, C, Q), dtype=jnp.float32)
    score2 = jax.random.normal(k2, (B, C, Q), dtype=jnp.float32)
    att1 = jax.random.uniform(k3, (B, C, Q), dtype=jnp.float32)  # A8/A9 input; see TODO(synk)
    # Precomputed outputs of the K constraint layers (stand-ins for A8/A9(att1)).
    datt_stack = jax.random.normal(k4, (K, B, C, Q), dtype=jnp.float32)

    # Deterministic parameter init: rho_w = ones(1) * opt.rho_w  (opt.rho_w = 0.5).
    rho_w = jnp.ones((1,), dtype=jnp.float32) * 0.5

    # force_pallas=True so the Pallas kernel itself is exercised at demo size
    # (the auto path would hand these ~2 KB to XLA fusion instead).
    out1, out2 = within_layer_forward(score1, score2, datt_stack, rho_w,
                                      force_pallas=True)
    out1, out2 = jax.block_until_ready((out1, out2))

    # Pure-JAX reference check of the forward semantics.
    ref1 = score1 + rho_w[0] * jnp.sum(datt_stack, axis=0)
    ref2 = score2 + rho_w[0] * 0.0
    assert jnp.allclose(out1, ref1, atol=1e-5), "score1 mismatch"
    assert jnp.allclose(out2, ref2, atol=1e-5), "score2 mismatch"

    print("KERNEL_OK")
</pallas_src>

<mosaic_0001>
module attributes {stable_mosaic.version = 11 : i64} {
  func.func @within_layer_kernel(%arg0: i32, %arg1: memref<1xf32, #tpu.memory_space<smem>>, %arg2: memref<8x512xf32, #tpu.memory_space<vmem>>, %arg3: memref<2x8x512xf32, #tpu.memory_space<vmem>>, %arg4: memref<8x512xf32, #tpu.memory_space<vmem>>) attributes {dimension_semantics = [#tpu.dimension_semantics<parallel>], iteration_bounds = array<i64: 1>, scalar_prefetch = 0 : i64, scratch_operands = 0 : i64, tpu.core_type = #tpu.core_type<tc>, window_params = [{transform_indices = @transform_0, window_bounds = array<i64: 1>}, {transform_indices = @transform_1, window_bounds = array<i64: 8, 512>}, {transform_indices = @transform_2, window_bounds = array<i64: 2, 8, 512>}, {transform_indices = @transform_3, window_bounds = array<i64: 8, 512>}]} {
    %c0 = arith.constant 0 : index
    %0 = memref.load %arg1[%c0] : memref<1xf32, #tpu.memory_space<smem>>
    %c0_0 = arith.constant 0 : index
    %c0_1 = arith.constant 0 : index
    %1 = vector.load %arg2[%c0_0, %c0_1] : memref<8x512xf32, #tpu.memory_space<vmem>>, vector<8x512xf32>
    %c0_2 = arith.constant 0 : index
    %c0_3 = arith.constant 0 : index
    %c0_4 = arith.constant 0 : index
    %2 = vector.load %arg3[%c0_2, %c0_3, %c0_4] : memref<2x8x512xf32, #tpu.memory_space<vmem>>, vector<2x8x512xf32>
    %cst = arith.constant dense<0.000000e+00> : vector<8x512xf32>
    %3 = vector.multi_reduction <add>, %2, %cst [0] : vector<2x8x512xf32> to vector<8x512xf32>
    %4 = vector.broadcast %0 : f32 to vector<8x512xf32>
    %5 = arith.mulf %4, %3 : vector<8x512xf32>
    %6 = arith.addf %1, %5 : vector<8x512xf32>
    %c0_5 = arith.constant 0 : index
    %c0_6 = arith.constant 0 : index
    %7 = vector.load %arg4[%c0_5, %c0_6] : memref<8x512xf32, #tpu.memory_space<vmem>>, vector<8x512xf32>
    tpu.vector_store %arg4[%c0_5, %c0_6], %6 {strides = array<i32>} : memref<8x512xf32, #tpu.memory_space<vmem>>, vector<8x512xf32>,
    return
  }
  func.func @transform_0(%arg0: i32) -> i32 {
    %c0_i32 = arith.constant 0 : i32
    %c0_i32_0 = arith.constant 0 : i32
    return %c0_i32 : i32
  }
  func.func @transform_1(%arg0: i32) -> (i32, i32) {
    %c0_i32 = arith.constant 0 : i32
    %c0_i32_0 = arith.constant 0 : i32
    return %arg0, %c0_i32 : i32, i32
  }
  func.func @transform_2(%arg0: i32) -> (i32, i32, i32) {
    %c0_i32 = arith.constant 0 : i32
    %c0_i32_0 = arith.constant 0 : i32
    %c0_i32_1 = arith.constant 0 : i32
    return %c0_i32, %arg0, %c0_i32_0 : i32, i32, i32
  }
  func.func @transform_3(%arg0: i32) -> (i32, i32) {
    %c0_i32 = arith.constant 0 : i32
    %c0_i32_0 = arith.constant 0 : i32
    return %arg0, %c0_i32 : i32, i32
  }
}

</mosaic_0001>

<llo_original>
// kernel: within_layer_forward.1
$region0: #{within_layer_forward.1}
  #allocation0 [shape = 'u32[]', space=smem, size = 0x4, offset = 0x4, fixed_abs, tag = 'smem constant byte address 0x4 - core index']
  #allocation1 [shape = 'u32[144,128]{1,0:T(1,128)}', space=vmem, size = 0x12000, scoped, tag = 'internal scratch']
  #allocation2 [shape = 'f32[1]{0:T(128)S(6)}', space=smem, size = 0x200, scoped, tag = 'scoped memory for within_layer_forward.1']
  %s0 = inlined_call_operand.<no memory space> [shape: f32[1], index: 0, kind: input, shape index: {}]
  %s1 = inlined_call_operand.vmem [shape: f32[8,512], index: 1, kind: input, shape index: {}]
  %s2 = inlined_call_operand.vmem [shape: f32[2,8,512], index: 2, kind: input, shape index: {}]
  %s3 = inlined_call_operand.vmem [shape: f32[8,512], index: 3, kind: output, shape index: {}]
  %s4 = sld [smem:[#allocation0]]
  $region22: #{within_layer_forward.1} parent=0
    _
  %s6 = ssub.s32 1, %s4
  %s7 = scalar_select 0, %s6, %s4
  %8 = sst [smem:[#allocation2]] %s0
  // Predicated region
  $region2: #{within_layer_forward.1} parent=0 // pred_check
    _
  $region3: #{within_layer_forward.1} parent=0 // pred_check_branch
    %10 = sbr.rel (0) target = $region5
  $region4: #{within_layer_forward.1} parent=0 // pred_region
    _
  $region5: #{within_layer_forward.1} parent=0 // pred_fallthru
    _
  // Predicated region
  $region6: #{within_layer_forward.1} parent=0 // pred_check
    _
  $region7: #{within_layer_forward.1} parent=0 // pred_check_branch
    %12 = sbr.rel (0) target = $region9
  $region8: #{within_layer_forward.1} parent=0 // pred_region
    _
  $region9: #{within_layer_forward.1} parent=0 // pred_fallthru
    _
  // Predicated region
  $region10: #{within_layer_forward.1} parent=0 // pred_check
    _
  $region11: #{within_layer_forward.1} parent=0 // pred_check_branch
    %14 = sbr.rel (0) target = $region13
  $region12: #{within_layer_forward.1} parent=0 // pred_region
    _
  $region13: #{within_layer_forward.1} parent=0 // pred_fallthru
    _
  %s15 = sld [smem:[#allocation2]]
  %v16 = vld [vmem:[%s1] sm:$0xff]
  %v17 = vld [vmem:[%s1 + $0x8] sm:$0xff]
  %v18 = vld [vmem:[%s1 + $0x10] sm:$0xff]
  %v19 = vld [vmem:[%s1 + $0x18] sm:$0xff]
  %v20 = vld [vmem:[%s2] sm:$0xff]
  %v21 = vld [vmem:[%s2 + $0x8] sm:$0xff]
  %v22 = vld [vmem:[%s2 + $0x10] sm:$0xff]
  %v23 = vld [vmem:[%s2 + $0x18] sm:$0xff]
  %v24 = vld [vmem:[%s2 + $0x20] sm:$0xff]
  %v25 = vld [vmem:[%s2 + $0x28] sm:$0xff]
  %v26 = vld [vmem:[%s2 + $0x30] sm:$0xff]
  %v27 = vld [vmem:[%s2 + $0x38] sm:$0xff]
  %v28 = vadd.f32 %v20, %v24
  %v29 = vadd.f32 %v21, %v25
  %v30 = vadd.f32 %v22, %v26
  %v31 = vadd.f32 %v23, %v27
  %v32 = vstv %s15
  %v33 = vmul.f32 %v32, %v28
  %v34 = vmul.f32 %v32, %v29
  %v35 = vmul.f32 %v32, %v30
  %v36 = vmul.f32 %v32, %v31
  %v37 = vadd.f32 %v16, %v33
  %v38 = vadd.f32 %v17, %v34
  %v39 = vadd.f32 %v18, %v35
  %v40 = vadd.f32 %v19, %v36
  %41 = vst [vmem:[%s3] sm:$0xff] %v37
  %42 = vst [vmem:[%s3 + $0x8] sm:$0xff] %v38
  %43 = vst [vmem:[%s3 + $0x10] sm:$0xff] %v39
  %44 = vst [vmem:[%s3 + $0x18] sm:$0xff] %v40
  // Predicated region
  $region14: #{within_layer_forward.1} parent=0 // pred_check
    _
  $region15: #{within_layer_forward.1} parent=0 // pred_check_branch
    %46 = sbr.rel (0) target = $region17
  $region16: #{within_layer_forward.1} parent=0 // pred_region
    _
  $region17: #{within_layer_forward.1} parent=0 // pred_fallthru
    _
  // Predicated region
  $region18: #{within_layer_forward.1} parent=0 // pred_check
    _
  $region19: #{within_layer_forward.1} parent=0 // pred_check_branch
    %48 = sbr.rel (0) target = $region21
  $region20: #{within_layer_forward.1} parent=0 // pred_region
    _
  $region21: #{within_layer_forward.1} parent=0 // pred_fallthru
    _

</llo_original>
